<compile_context>
chip_gen: v7x
topology: tpu7x:2x2x1
jax: 0.10.0
libtpu: 0.0.40
codegen_flags: <defaults>
</compile_context>

<pallas_src>
import numpy as np
import jax
import jax.numpy as jnp
from jax.experimental import pallas as pl
from jax.experimental.pallas import tpu as pltpu


# ----------------------------------------------------------------------------
# Pallas kernel: fused identity-branch 1x1 conv + pyramid add + ReLU
# ----------------------------------------------------------------------------
def _fused_bottleneck_kernel(x_ref, w_ref, pyr_ref, o_ref):
    # x_ref:   (C, TM)     input pixels: channels on sublanes, pixels on lanes
    # w_ref:   (Cout, C)   bottleneck weight slice for the identity branch
    # pyr_ref: (Cout, TM)  upsampled pyramid contributions + bias (f32)
    # o_ref:   (Cout, TM)
    x = x_ref[...].astype(w_ref.dtype)          # bf16 cast in-register (no HBM cost)
    acc = jnp.dot(w_ref[...], x, preferred_element_type=jnp.float32)
    o_ref[...] = jnp.maximum(acc + pyr_ref[...].astype(jnp.float32),
                             0.0).astype(o_ref.dtype)


def fused_bottleneck(x2, w, pyr2, *, tile_hw=512,
                     vmem_limit_bytes=64 * 1024 * 1024):
    """out[n, :, t] = relu(w @ x2[n, :, t] + pyr2[n, :, t]).

    x2:   (N, C, HW)     channels-first feature map, spatial flattened
    w:    (Cout, C)      identity-branch bottleneck weight (compute dtype)
    pyr2: (N, Cout, HW)  precomputed pyramid + bias term (f32)
    """
    N, C, HW = x2.shape
    Cout, Cw = w.shape
    assert Cw == C and pyr2.shape == (N, Cout, HW)

    if HW <= tile_hw:
        tm = HW                                   # full extent: always legal
    else:
        tm = max(128, (min(tile_hw, HW) // 128) * 128)   # lane-dense tile
    grid = (N, pl.cdiv(HW, tm))

    out_dtype = x2.dtype
    isz = lambda a: jnp.dtype(a.dtype).itemsize
    cost = pl.CostEstimate(
        flops=2 * N * HW * C * Cout,
        transcendentals=0,
        bytes_accessed=(x2.size * isz(x2) + w.size * isz(w)
                        + pyr2.size * isz(pyr2)
                        + N * Cout * HW * jnp.dtype(out_dtype).itemsize))

    return pl.pallas_call(
        _fused_bottleneck_kernel,
        out_shape=jax.ShapeDtypeStruct((N, Cout, HW), out_dtype),
        grid_spec=pltpu.PrefetchScalarGridSpec(
            num_scalar_prefetch=0,
            grid=grid,
            in_specs=[
                pl.BlockSpec((None, C, tm), lambda n, t: (n, 0, t)),
                # TODO(synk): pipeline_mode=pl.Buffered(1) would stop
                # double-buffering this grid-invariant weight; left at the
                # default for lowering safety (it is small: Cout*C*2 bytes).
                pl.BlockSpec((Cout, C), lambda n, t: (0, 0)),
                pl.BlockSpec((None, Cout, tm), lambda n, t: (n, 0, t)),
            ],
            out_specs=pl.BlockSpec((None, Cout, tm), lambda n, t: (n, 0, t)),
        ),
        compiler_params=pltpu.CompilerParams(
            dimension_semantics=("parallel", "parallel"),
            vmem_limit_bytes=vmem_limit_bytes),
        cost_estimate=cost,
    )(x2, w, pyr2)


# ----------------------------------------------------------------------------
# Small helpers (numpy, trace-time constants)
# ----------------------------------------------------------------------------
def _adaptive_pool_matrix(out_size, in_size):
    """(out_size, in_size) matrix replicating nn.AdaptiveAvgPool2d bin rule."""
    P = np.zeros((out_size, in_size), dtype=np.float32)
    for i in range(out_size):
        start = (i * in_size) // out_size
        end = -((-(i + 1) * in_size) // out_size)          # ceil((i+1)*in/out)
        P[i, start:end] = 1.0 / (end - start)
    return P


def _bilinear_matrix(out_size, in_size, align_corners=False):
    """(out_size, in_size) matrix for 1-D bilinear upsampling."""
    M = np.zeros((out_size, in_size), dtype=np.float32)
    if in_size == 1:
        M[:, 0] = 1.0
        return M
    for i in range(out_size):
        if align_corners:
            scale = (in_size - 1) / (out_size - 1) if out_size > 1 else 0.0
            src = i * scale
        else:
            scale = in_size / out_size
            src = max((i + 0.5) * scale - 0.5, 0.0)
        i0 = min(int(np.floor(src)), in_size - 1)
        i1 = min(i0 + 1, in_size - 1)
        lam = src - i0
        M[i, i0] += 1.0 - lam
        M[i, i1] += lam
    return M


# ----------------------------------------------------------------------------
# Parameters (mirror the PyTorch module's tensors)
# ----------------------------------------------------------------------------
def init_psp_params(key, features, out_features, sizes):
    n_stages = len(sizes)
    keys = jax.random.split(key, n_stages + 2)
    return {
        # per-stage 1x1 conv weights (C_out=C, C_in=C), no bias
        "stage_w": [
            jax.random.normal(keys[i], (features, features), jnp.float32) * 0.1
            for i in range(n_stages)
        ],
        # bottleneck 1x1 conv: (out_features, features*(n_stages+1)) + bias
        "bottleneck_w": jax.random.normal(
            keys[n_stages], (out_features, features * (n_stages + 1)),
            jnp.float32) * 0.05,
        "bottleneck_b": jax.random.normal(
            keys[n_stages + 1], (out_features,), jnp.float32) * 0.01,
    }


# ----------------------------------------------------------------------------
# PSPModule forward (NCHW in -> NCHW out, matching the PyTorch module)
# ----------------------------------------------------------------------------
def psp_module_forward(feats, params, sizes=(1, 2, 3, 6), *,
                       align_corners=False, tile_hw=512,
                       compute_dtype=jnp.bfloat16):
    N, C, H, W = feats.shape
    n_stages = len(sizes)
    Wb = params["bottleneck_w"]                      # (Cout, (n_stages+1)*C)
    b = params["bottleneck_b"]                       # (Cout,)
    Cout = b.shape[0]

    # ---- tiny glue (channels-first; only the final pyramid term is H*W-sized)
    # 1) all adaptive average pools in a single pass over feats
    Ph_all = jnp.asarray(
        np.concatenate([_adaptive_pool_matrix(s, H) for s in sizes], axis=0))
    Pw_all = jnp.asarray(
        np.concatenate([_adaptive_pool_matrix(s, W) for s in sizes], axis=0))
    pooled = jnp.einsum("ph,qw,nchw->ncpq", Ph_all, Pw_all, feats)

    # 2) fold stage conv + bottleneck weight slice into the tiny pooled grids;
    #    place each stage on the block-diagonal of z (cross terms are zero);
    #    a trailing 1x1 pseudo-stage with all-ones upsample columns carries the
    #    bottleneck bias so the kernel needs no separate bias input.
    Ssum = sum(sizes)
    z = jnp.zeros((N, Cout, Ssum + 1, Ssum + 1), jnp.float32)
    uy_cols, ux_cols = [], []
    off = 0
    for si, s in enumerate(sizes):
        w_comb = Wb[:, si * C:(si + 1) * C] @ params["stage_w"][si]   # (Cout,C)
        z_s = jnp.einsum("oc,ncpq->nopq", w_comb,
                         pooled[:, :, off:off + s, off:off + s])
        z = z.at[:, :, off:off + s, off:off + s].set(z_s)
        uy_cols.append(_bilinear_matrix(H, s, align_corners))
        ux_cols.append(_bilinear_matrix(W, s, align_corners))
        off += s
    z = z.at[:, :, Ssum, Ssum].set(jnp.broadcast_to(b, (N, Cout)))
    uy_cols.append(np.ones((H, 1), np.float32))
    ux_cols.append(np.ones((W, 1), np.float32))
    Uy = jnp.asarray(np.concatenate(uy_cols, axis=1))    # (H, Ssum+1)
    Ux = jnp.asarray(np.concatenate(ux_cols, axis=1))    # (W, Ssum+1)

    # 3) one bilinear-upsample einsum for all pyramid branches + bias
    pyr = jnp.einsum("hp,wq,nopq->nohw", Uy, Ux, z)      # (N, Cout, H, W)
    # TODO(synk): the H-direction upsample could move inside the Pallas kernel
    # (row-aligned tiles) to avoid materializing this (N,Cout,H,W) term in HBM.

    # ---- hot path: identity-branch matmul + pyramid add + ReLU in Pallas
    w_x = Wb[:, n_stages * C:].astype(compute_dtype)     # (Cout, C)
    out2 = fused_bottleneck(feats.reshape(N, C, H * W), w_x,
                            pyr.reshape(N, Cout, H * W), tile_hw=tile_hw)
    return out2.reshape(N, Cout, H, W)


# ----------------------------------------------------------------------------
# Pure-JAX reference (direct, unfused translation of the PyTorch module)
# ----------------------------------------------------------------------------
def psp_module_reference(feats, params, sizes=(1, 2, 3, 6), align_corners=False):
    N, C, H, W = feats.shape
    priors = []
    for si, s in enumerate(sizes):
        Ph = jnp.asarray(_adaptive_pool_matrix(s, H))
        Pw = jnp.asarray(_adaptive_pool_matrix(s, W))
        pooled = jnp.einsum("ph,qw,nchw->ncpq", Ph, Pw, feats)
        conv = jnp.einsum("oc,ncpq->nopq", params["stage_w"][si], pooled)
        Uy = jnp.asarray(_bilinear_matrix(H, s, align_corners))
        Ux = jnp.asarray(_bilinear_matrix(W, s, align_corners))
        priors.append(jnp.einsum("hp,wq,nopq->nohw", Uy, Ux, conv))
    priors.append(feats)
    cat = jnp.concatenate(priors, axis=1)
    out = jnp.einsum("ok,nkhw->nohw", params["bottleneck_w"], cat)
    out = out + params["bottleneck_b"][None, :, None, None]
    return jnp.maximum(out, 0.0)


if __name__ == "__main__":
    N, C, H, W = 2, 4, 16, 16
    out_features = 32
    sizes = (1, 2, 3, 6)

    key = jax.random.PRNGKey(0)
    k_in, k_par = jax.random.split(key)
    feats = jax.random.normal(k_in, (N, C, H, W), jnp.float32)
    params = init_psp_params(k_par, C, out_features, sizes)

    fwd = jax.jit(lambda x: psp_module_forward(x, params, sizes))
    out = jax.block_until_ready(fwd(feats))

    assert out.shape == (N, out_features, H, W)
    assert bool(jnp.all(out >= 0.0))                      # ReLU

    ref = psp_module_reference(feats, params, sizes)
    err = float(jnp.max(jnp.abs(out - ref)))
    assert err < 5e-2, f"mismatch vs reference: {err}"

    print("KERNEL_OK")
</pallas_src>

<mosaic_0001>
module attributes {stable_mosaic.version = 11 : i64} {
  func.func @_fused_bottleneck_kernel(%arg0: i32, %arg1: i32, %arg2: memref<1x4x256xf32, #tpu.memory_space<vmem>>, %arg3: memref<32x4xbf16, #tpu.memory_space<vmem>>, %arg4: memref<1x32x256xf32, #tpu.memory_space<vmem>>, %arg5: memref<1x32x256xf32, #tpu.memory_space<vmem>>) attributes {dimension_semantics = [#tpu.dimension_semantics<parallel>, #tpu.dimension_semantics<parallel>], iteration_bounds = array<i64: 2, 1>, scalar_prefetch = 0 : i64, scratch_operands = 0 : i64, tpu.core_type = #tpu.core_type<tc>, window_params = [{transform_indices = @transform_0, window_bounds = array<i64: 1, 4, 256>}, {pipeline_mode = #tpu.pipeline_mode<synchronous>, transform_indices = @transform_1, window_bounds = array<i64: 32, 4>}, {transform_indices = @transform_2, window_bounds = array<i64: 1, 32, 256>}, {transform_indices = @transform_3, window_bounds = array<i64: 1, 32, 256>}]} {
    %c0 = arith.constant 0 : index
    %c0_0 = arith.constant 0 : index
    %c0_1 = arith.constant 0 : index
    %0 = vector.load %arg2[%c0, %c0_0, %c0_1] : memref<1x4x256xf32, #tpu.memory_space<vmem>>, vector<1x4x256xf32>
    %1 = vector.shape_cast %0 : vector<1x4x256xf32> to vector<4x256xf32>
    %2 = arith.truncf %1 : vector<4x256xf32> to vector<4x256xbf16>
    %c0_2 = arith.constant 0 : index
    %c0_3 = arith.constant 0 : index
    %3 = vector.load %arg3[%c0_2, %c0_3] : memref<32x4xbf16, #tpu.memory_space<vmem>>, vector<32x4xbf16>
    %cst = arith.constant dense<0.000000e+00> : vector<32x256xf32>
    %4 = tpu.matmul %3, %2, %cst {dimension_numbers = #tpu.dot_dimension_numbers<[1], [0], [0], [1], [0, 0, 1, 1], [], []>} : vector<32x4xbf16>, vector<4x256xbf16>, vector<32x256xf32> -> vector<32x256xf32>
    %c0_4 = arith.constant 0 : index
    %c0_5 = arith.constant 0 : index
    %c0_6 = arith.constant 0 : index
    %5 = vector.load %arg4[%c0_4, %c0_5, %c0_6] : memref<1x32x256xf32, #tpu.memory_space<vmem>>, vector<1x32x256xf32>
    %6 = vector.shape_cast %5 : vector<1x32x256xf32> to vector<32x256xf32>
    %7 = arith.addf %4, %6 : vector<32x256xf32>
    %cst_7 = arith.constant 0.000000e+00 : f32
    %8 = vector.broadcast %cst_7 : f32 to vector<32x256xf32>
    %9 = arith.maximumf %7, %8 : vector<32x256xf32>
    %c0_8 = arith.constant 0 : index
    %c0_9 = arith.constant 0 : index
    %c0_10 = arith.constant 0 : index
    %10 = vector.load %arg5[%c0_8, %c0_9, %c0_10] : memref<1x32x256xf32, #tpu.memory_space<vmem>>, vector<1x32x256xf32>
    %11 = vector.shape_cast %10 : vector<1x32x256xf32> to vector<32x256xf32>
    %12 = vector.shape_cast %9 : vector<32x256xf32> to vector<1x32x256xf32>
    tpu.vector_store %arg5[%c0_8, %c0_9, %c0_10], %12 {strides = array<i32>} : memref<1x32x256xf32, #tpu.memory_space<vmem>>, vector<1x32x256xf32>,
    return
  }
  func.func @transform_0(%arg0: i32, %arg1: i32) -> (i32, i32, i32) {
    %c0_i32 = arith.constant 0 : i32
    %c0_i32_0 = arith.constant 0 : i32
    return %arg0, %c0_i32, %arg1 : i32, i32, i32
  }
  func.func @transform_1(%arg0: i32, %arg1: i32) -> (i32, i32) {
    %c0_i32 = arith.constant 0 : i32
    %c0_i32_0 = arith.constant 0 : i32
    %c0_i32_1 = arith.constant 0 : i32
    return %c0_i32, %c0_i32_0 : i32, i32
  }
  func.func @transform_2(%arg0: i32, %arg1: i32) -> (i32, i32, i32) {
    %c0_i32 = arith.constant 0 : i32
    %c0_i32_0 = arith.constant 0 : i32
    return %arg0, %c0_i32, %arg1 : i32, i32, i32
  }
  func.func @transform_3(%arg0: i32, %arg1: i32) -> (i32, i32, i32) {
    %c0_i32 = arith.constant 0 : i32
    %c0_i32_0 = arith.constant 0 : i32
    return %arg0, %c0_i32, %arg1 : i32, i32, i32
  }
}

</mosaic_0001>

<llo_original>
// kernel: _lambda_.1
$region0: #{_lambda_.1}
  #allocation0 [shape = 'u32[]', space=smem, size = 0x4, offset = 0x4, fixed_abs, tag = 'smem constant byte address 0x4 - core index']
  #allocation1 [shape = 'u32[144,128]{1,0:T(1,128)}', space=vmem, size = 0x12000, scoped, tag = 'internal scratch']
  %s0 = inlined_call_operand.hbm [shape: f32[2,4,256], index: 0, kind: input, shape index: {}]
  %s1 = inlined_call_operand.hbm [shape: bf16[32,4], index: 1, kind: input, shape index: {}]
  %s2 = inlined_call_operand.hbm [shape: f32[2,32,256], index: 2, kind: input, shape index: {}]
  %s3 = inlined_call_operand.hbm [shape: f32[2,32,256], index: 3, kind: output, shape index: {}]
  %s4 = sld [smem:[#allocation0]]
  $region57: #{_lambda_.1} parent=0
    _
  %s6 = ssub.s32 1, %s4
  %s7 = scalar_select 0, %s6, %s4
  $region1: #{_lambda_.1} parent=0
    #allocation2 [shape = 'u8[8192]{0}', space=vmem, size = 0x2000, scoped, tag = 'input window, operand 0']
    #allocation3 [shape = 's32[2]{0}', space=sflag, size = 0x8, scoped, tag = 'scoped memory for _lambda_.1']
    #allocation4 [shape = 's32[2]{0}', space=sflag, size = 0x8, scoped, tag = 'scoped memory for _lambda_.1']
    #allocation5 [shape = 'u8[8192]{0}', space=vmem, size = 0x2000, scoped, tag = 'input window, operand 1, single buffered']
    #allocation6 [shape = 's32[1]{0}', space=sflag, size = 0x4, scoped, tag = 'scoped memory for _lambda_.1']
    #allocation7 [shape = 'u8[65536]{0}', space=vmem, size = 0x10000, scoped, tag = 'input window, operand 2']
    #allocation8 [shape = 'u8[65536]{0}', space=vmem, size = 0x10000, scoped, tag = 'output window, operand 0']
    %8 = vsyncpa [#allocation3], 0
    %s9 = scalar_lea.sflag [#allocation3], 1
    %10 = vsyncpa %s9, 0
    %11 = vsyncpa [#allocation6], 0
    %12 = vsyncpa [#allocation4], 0
    %s13 = scalar_lea.sflag [#allocation4], 1
    %14 = vsyncpa %s13, 0
    loop: start=0, step=1, limit=4
    $region2: #{_lambda_.1} parent=1 // loop_pre_header
      _
    $region3: #{_lambda_.1} parent=1 // loop_header
      %s16 = sphi 0, %s20
      %p17 = scmp.ge.s32.totalorder %s16, 4
      %s23 = sphi 0, %s35
      %s24 = sphi 0, %s31
      %s25 = sphi 0, %s23
      %s26 = sphi 0, %s24
      %s27 = sphi 0, %s25
      %s28 = sphi 0, %s26
      %s40 = sphi 0, %s42
      %s43 = sphi 0, %s40
      %s44 = sphi 0, %s43
      %s60 = sphi 0, %s44
      %s64 = sphi 0, %s64
      %s66 = sphi 0, %s64
      %s67 = sphi 0, %s66
      %s81 = sphi 0, %s67
      %s89 = sphi 0, %s91
      %s92 = sphi 0, %s89
      %s93 = sphi 0, %s92
      %s109 = sphi 0, %s93
      %s117 = sphi 0, %s119
      %s120 = sphi 0, %s117
      %s121 = sphi 0, %s120
      %s137 = sphi 0, %s121
    $region4: #{_lambda_.1} parent=1 // loop_header_branch
      %19 = sbr.rel (%p17) target = $region8
    $region5: #{_lambda_.1} parent=1 // loop_body
      %s21 = ssub.s32 %s16, 1
      %s22 = ssub.s32 %s16, 2
      %s29 = sadd.s32 1, %s24
      %p30 = scmp.ge.s32.totalorder %s29, 1
      %s31 = scalar_select %p30, 0, %s29
      %s32 = sadd.s32 1, %s23
      %s33 = scalar_select %p30, %s32, %s23
      %p34 = scmp.ge.s32.totalorder %s33, 2
      %s35 = scalar_select %p34, 0, %s33
      %s36 = ssub.s32 %s23, %s35
      %s37 = ssub.s32 %s24, %s31
      %s38 = sor.u32 %s36, %s37
      %p39 = scmp.eq.s32.totalorder %s38, 0
      %s41 = sadd.s32 %s40, 1
      %s42 = scalar_select %p39, %s40, %s41
      %p45 = pneg %p39
      %p46 = scmp.eq.s32.totalorder %s16, 1
      %p47 = por %p45, %p46
      %p48 = scmp.ne.s32.totalorder %s40, %s43
      %p49 = scmp.eq.s32.totalorder %s16, 0
      %p50 = por %p48, %p49
      %p51 = scmp.ne.s32.totalorder %s40, %s43
      %p52 = scmp.eq.s32.totalorder %s21, 1
      %p53 = por %p51, %p52
      %p54 = scmp.ne.s32.totalorder %s43, %s44
      %p55 = scmp.eq.s32.totalorder %s21, 0
      %p56 = por %p54, %p55
      %p57 = scmp.ne.s32.totalorder %s43, %s44
      %p58 = scmp.eq.s32.totalorder %s22, 1
      %p59 = por %p57, %p58
      %p61 = scmp.ne.s32.totalorder %s44, %s60
      %p62 = scmp.eq.s32.totalorder %s22, 0
      %p63 = por %p61, %p62
      %s65 = sadd.s32 %s64, 1
      %p68 = scmp.eq.s32.totalorder %s16, 1
      %p69 = scmp.ne.s32.totalorder %s64, %s66
      %p70 = scmp.eq.s32.totalorder %s16, 0
      %p71 = por %p69, %p70
      %p72 = scmp.ne.s32.totalorder %s64, %s66
      %p73 = scmp.eq.s32.totalorder %s21, 1
      %p74 = por %p72, %p73
      %p75 = scmp.ne.s32.totalorder %s66, %s67
      %p76 = scmp.eq.s32.totalorder %s21, 0
      %p77 = por %p75, %p76
      %p78 = scmp.ne.s32.totalorder %s66, %s67
      %p79 = scmp.eq.s32.totalorder %s22, 1
      %p80 = por %p78, %p79
      %p82 = scmp.ne.s32.totalorder %s67, %s81
      %p83 = scmp.eq.s32.totalorder %s22, 0
      %p84 = por %p82, %p83
      %s85 = ssub.s32 %s23, %s35
      %s86 = ssub.s32 %s24, %s31
      %s87 = sor.u32 %s85, %s86
      %p88 = scmp.eq.s32.totalorder %s87, 0
      %s90 = sadd.s32 %s89, 1
      %s91 = scalar_select %p88, %s89, %s90
      %p94 = pneg %p88
      %p95 = scmp.eq.s32.totalorder %s16, 1
      %p96 = por %p94, %p95
      %p97 = scmp.ne.s32.totalorder %s89, %s92
      %p98 = scmp.eq.s32.totalorder %s16, 0
      %p99 = por %p97, %p98
      %p100 = scmp.ne.s32.totalorder %s89, %s92
      %p101 = scmp.eq.s32.totalorder %s21, 1
      %p102 = por %p100, %p101
      %p103 = scmp.ne.s32.totalorder %s92, %s93
      %p104 = scmp.eq.s32.totalorder %s21, 0
      %p105 = por %p103, %p104
      %p106 = scmp.ne.s32.totalorder %s92, %s93
      %p107 = scmp.eq.s32.totalorder %s22, 1
      %p108 = por %p106, %p107
      %p110 = scmp.ne.s32.totalorder %s93, %s109
      %p111 = scmp.eq.s32.totalorder %s22, 0
      %p112 = por %p110, %p111
      %s113 = ssub.s32 %s23, %s35
      %s114 = ssub.s32 %s24, %s31
      %s115 = sor.u32 %s113, %s114
      %p116 = scmp.eq.s32.totalorder %s115, 0
      %s118 = sadd.s32 %s117, 1
      %s119 = scalar_select %p116, %s117, %s118
      %p122 = pneg %p116
      %p123 = scmp.eq.s32.totalorder %s16, 1
      %p124 = por %p122, %p123
      %p125 = scmp.ne.s32.totalorder %s117, %s120
      %p126 = scmp.eq.s32.totalorder %s16, 0
      %p127 = por %p125, %p126
      %p128 = scmp.ne.s32.totalorder %s117, %s120
      %p129 = scmp.eq.s32.totalorder %s21, 1
      %p130 = por %p128, %p129
      %p131 = scmp.ne.s32.totalorder %s120, %s121
      %p132 = scmp.eq.s32.totalorder %s21, 0
      %p133 = por %p131, %p132
      %p134 = scmp.ne.s32.totalorder %s120, %s121
      %p135 = scmp.eq.s32.totalorder %s22, 1
      %p136 = por %p134, %p135
      %p138 = scmp.ne.s32.totalorder %s121, %s137
      %p139 = scmp.eq.s32.totalorder %s22, 0
      %p140 = por %p138, %p139
      %p141 = scmp.le.s32.totalorder 1, %s16
      %p142 = scmp.lt.s32.totalorder %s16, 3
      %p143 = pnand %p141, %p142
      %p144 = pneg %p143
      // Predicated region
      $region9: #{_lambda_.1} parent=5 // pred_check
        _
      $region10: #{_lambda_.1} parent=5 // pred_check_branch
        %146 = sbr.rel (%p143) target = $region12
      $region11: #{_lambda_.1} parent=5 // pred_region
        %s147 = ssub.s32 %s16, 1
        // Predicated region
        $region13: #{_lambda_.1} parent=11 // pred_check
          %p148 = pneg %p77
        $region14: #{_lambda_.1} parent=11 // pred_check_branch
          %150 = sbr.rel (%p148) target = $region16
        $region15: #{_lambda_.1} parent=11 // pred_region
          %s152 = ssub.s32 256, 256
          %153 = vsyncadd [#allocation6], %s152
          %s154 = sshll.u32 [#allocation5], 4
          %s155 = int_to_ptr.vmem [resolvable:$true] %s154
          %160 = dma.hbm_to_vmem [thread:$0]  %s1, 256, %s155, [#allocation6], 64, 64, 4
        $region16: #{_lambda_.1} parent=11 // pred_fallthru
          _
      $region12: #{_lambda_.1} parent=5 // pred_fallthru
        _
      %p161 = scmp.lt.s32.totalorder %s16, 2
      // Predicated region
      $region17: #{_lambda_.1} parent=5 // pred_check
        %p162 = pneg %p161
      $region18: #{_lambda_.1} parent=5 // pred_check_branch
        %164 = sbr.rel (%p162) target = $region20
      $region19: #{_lambda_.1} parent=5 // pred_region
        // Predicated region
        $region21: #{_lambda_.1} parent=19 // pred_check
          %p165 = pneg %p50
        $region22: #{_lambda_.1} parent=19 // pred_check_branch
          %167 = sbr.rel (%p165) target = $region24
        $region23: #{_lambda_.1} parent=19 // pred_region
          %s168 = sand.u32 %s16, 1
          %s169 = scalar_lea.sflag [#allocation3], %s168
          %s170 = sand.u32 %s40, 1
          %s171 = smul.addr %s170, 8
          %s172 = scalar_lea.vmem [#allocation2], %s171
          %s173 = smul.u32 2, %s24
          %s175 = ssub.s32 128, 128
          %176 = vsyncadd %s169, %s175
          %s177 = smul.addr %s23, 2
          %s178 = sadd.s32 %s173, %s177
          %s179 = smul.addr %s178, 64
          %s180 = scalar_lea.hbm %s0, %s179
          %s182 = sshll.u32 %s172, 4
          %s183 = int_to_ptr.vmem [resolvable:$true] %s182
          %185 = dma.hbm_to_vmem [thread:$0]  %s180, 128, %s183, %s169
        $region24: #{_lambda_.1} parent=19 // pred_fallthru
          _
        // Predicated region
        $region25: #{_lambda_.1} parent=19 // pred_check
          %p186 = pneg %p99
        $region26: #{_lambda_.1} parent=19 // pred_check_branch
          %188 = sbr.rel (%p186) target = $region28
        $region27: #{_lambda_.1} parent=19 // pred_region
          %s189 = sand.u32 %s16, 1
          %s190 = scalar_lea.sflag [#allocation3], %s189
          %s191 = sand.u32 %s89, 1
          %s192 = smul.addr %s191, 64
          %s193 = scalar_lea.vmem [#allocation7], %s192
          %s194 = smul.u32 2, %s24
          %s196 = ssub.s32 1024, 1024
          %197 = vsyncadd %s190, %s196
          %s198 = smul.addr %s23, 8
          %s199 = sadd.s32 %s194, %s198
          %s200 = smul.addr %s199, 128
          %s201 = scalar_lea.hbm %s2, %s200
          %s202 = sshll.u32 %s193, 4
          %s203 = int_to_ptr.vmem [resolvable:$true] %s202
          %208 = dma.hbm_to_vmem [thread:$0]  %s201, 1024, %s203, %s190, 256, 256, 16
        $region28: #{_lambda_.1} parent=19 // pred_fallthru
          _
      $region20: #{_lambda_.1} parent=5 // pred_fallthru
        _
      %p209 = scmp.le.s32.totalorder 1, %s16
      %p210 = scmp.lt.s32.totalorder %s16, 3
      %p211 = pnand %p209, %p210
      %p212 = pneg %p211
      // Predicated region
      $region29: #{_lambda_.1} parent=5 // pred_check
        _
      $region30: #{_lambda_.1} parent=5 // pred_check_branch
        %214 = sbr.rel (%p211) target = $region32
      $region31: #{_lambda_.1} parent=5 // pred_region
        %s215 = ssub.s32 %s16, 1
        %s216 = sand.u32 %s21, 1
        %s217 = scalar_lea.sflag [#allocation3], %s216
        %s218 = sand.u32 %s43, 1
        %s219 = smul.addr %s218, 8
        %s220 = scalar_lea.vmem [#allocation2], %s219
        // Predicated region
        $region33: #{_lambda_.1} parent=31 // pred_check
          %p221 = pneg %p56
        $region34: #{_lambda_.1} parent=31 // pred_check_branch
          %223 = sbr.rel (%p221) target = $region36
        $region35: #{_lambda_.1} parent=31 // pred_region
          %224 = dma.done %s217, 128
        $region36: #{_lambda_.1} parent=31 // pred_fallthru
          _
        // Predicated region
        $region37: #{_lambda_.1} parent=31 // pred_check
          %p225 = pneg %p77
        $region38: #{_lambda_.1} parent=31 // pred_check_branch
          %227 = sbr.rel (%p225) target = $region40
        $region39: #{_lambda_.1} parent=31 // pred_region
          %228 = dma.done [#allocation6], 256
        $region40: #{_lambda_.1} parent=31 // pred_fallthru
          _
        %s229 = sand.u32 %s21, 1
        %s230 = scalar_lea.sflag [#allocation3], %s229
        %s231 = sand.u32 %s92, 1
        %s232 = smul.addr %s231, 64
        %s233 = scalar_lea.vmem [#allocation7], %s232
        // Predicated region
        $region41: #{_lambda_.1} parent=31 // pred_check
          %p234 = pneg %p105
        $region42: #{_lambda_.1} parent=31 // pred_check_branch
          %236 = sbr.rel (%p234) target = $region44
        $region43: #{_lambda_.1} parent=31 // pred_region
          %237 = dma.done %s230, 1024
        $region44: #{_lambda_.1} parent=31 // pred_fallthru
          _
        %s238 = sand.u32 %s21, 1
        %s239 = scalar_lea.sflag [#allocation3], %s238
        %s240 = sand.u32 %s43, 1
        %s241 = smul.addr %s240, 8
        %s242 = scalar_lea.vmem [#allocation2], %s241
        %p243 = pneg %p56
        %p244 = pneg %p53
        %p245 = pneg %p77
        %p246 = pneg %p74
        %s247 = sand.u32 %s21, 1
        %s248 = scalar_lea.sflag [#allocation3], %s247
        %s249 = sand.u32 %s92, 1
        %s250 = smul.addr %s249, 64
        %s251 = scalar_lea.vmem [#allocation7], %s250
        %p252 = pneg %p105
        %p253 = pneg %p102
        %p254 = pneg %p133
        %p255 = pneg %p130
        %s256 = sand.u32 %s120, 1
        %s257 = scalar_lea.sflag [#allocation4], %s256
        %s258 = sand.u32 %s120, 1
        %s259 = smul.addr %s258, 64
        %s260 = scalar_lea.vmem [#allocation8], %s259
        %s261 = smul.u32 2, %s26
        %s262 = smul.u32 2, %s26
        %s263 = smul.u32 2, %s26
        %v265 = vld [vmem:[%s220] sm:$0xff]
        %v267 = vcombine.high %v265, %v265
        %v269 = vpack.c.bf16 %v265, %v265
        %v270 = vpack.c.bf16 %v267, %v267
        %v271 = vld [vmem:[#allocation5] sm:$0xf]
        %v272 = vld [vmem:[#allocation5 + $0x4] sm:$0xf]
        %v273 = vld [vmem:[#allocation5 + $0x8] sm:$0xf]
        %v274 = vld [vmem:[#allocation5 + $0xc] sm:$0xf]
        %v275 = vld [vmem:[%s233] sm:$0xff]
        %v276 = vld [vmem:[%s233 + $0x8] sm:$0xff]
        %v277 = vld [vmem:[%s233 + $0x10] sm:$0xff]
        %v278 = vld [vmem:[%s233 + $0x18] sm:$0xff]
        %v279 = vld [vmem:[%s233 + $0x20] sm:$0xff]
        %v280 = vld [vmem:[%s233 + $0x28] sm:$0xff]
        %v281 = vld [vmem:[%s233 + $0x30] sm:$0xff]
        %v282 = vld [vmem:[%s233 + $0x38] sm:$0xff]
        %v287 = vunpack.c.l.b16 %v271
        %v288 = vunpack.c.l.b16 %v272
        %v289 = vunpack.c.l.b16 %v273
        %v290 = vunpack.c.l.b16 %v274
        %v291 = vpack.c.b16 %v288, %v287
        %v292 = vpack.c.b16 %v290, %v289
        %vm293 = vcmask 31744
        %v295 = vsel %vm293, %v291, 0
        %v298 = vsel %vm293, %v292, 0
        %vm300 = vcmask 1041408
        %v302 = vsel %vm300, %v269, 0
        %v305 = vsel %vm300, %v270, 0
        %307 = vmatprep.subr.bf16.mxu0 %v305
        %308 = vmatpush1.bf16.msra.mxu0 %v302
        %309 = vmatprep.subr.bf16.mxu0 0
        %310 = vmatpush1.bf16.msra.mxu0 0
        %311 = vmatprep.subr.bf16.mxu0 0
        %312 = vmatpush1.bf16.msra.mxu0 0
        %313 = vmatprep.subr.bf16.mxu0 0
        %314 = vmatpush1.bf16.msra.mxu0 0
        %315 = vmatprep.subr.bf16.mxu0 0
        %316 = vmatpush1.bf16.msra.mxu0 0
        %317 = vmatprep.subr.bf16.mxu0 0
        %318 = vmatpush1.bf16.msra.mxu0 0
        %319 = vmatprep.subr.bf16.mxu0 0
        %320 = vmatpush1.bf16.msra.mxu0 0
        %321 = vmatprep.subr.bf16.mxu0 0
        %322 = vmatpush1.bf16.msra.mxu0 0
        %323 = vmatprep.subr.bf16.mxu0 0
        %324 = vmatpush1.bf16.msra.mxu0 0
        %325 = vmatprep.subr.bf16.mxu0 0
        %326 = vmatpush1.bf16.msra.mxu0 0
        %327 = vmatprep.subr.bf16.mxu0 0
        %328 = vmatpush1.bf16.msra.mxu0 0
        %329 = vmatprep.subr.bf16.mxu0 0
        %330 = vmatpush1.bf16.msra.mxu0 0
        %331 = vmatprep.subr.bf16.mxu0 0
        %332 = vmatpush1.bf16.msra.mxu0 0
        %333 = vmatprep.subr.bf16.mxu0 0
        %334 = vmatpush1.bf16.msra.mxu0 0
        %335 = vmatprep.subr.bf16.mxu0 0
        %336 = vmatpush1.bf16.msra.mxu0 0
        %337 = vmatprep.subr.bf16.mxu0 0
        %338 = vmatpush1.bf16.msra.mxu0 0
        %339 = vmatprep.mubr.bf16.mxu0 0
        %340 = vmatmul.mubr.bf16.gmra.mrb[0].mxu0 %v295
        %v341 = vpop.f32.mrb[0].mxu0
        %v342 = vadd.f32 %v275, %v341
        %v343 = vpop.f32.mrb[0].mxu0
        %v344 = vadd.f32 %v276, %v343
        %v345 = vpop.f32.mrb[0].mxu0
        %v346 = vadd.f32 %v277, %v345
        %v347 = vpop.f32.mrb[0].mxu0
        %v348 = vadd.f32 %v278, %v347
        %349 = vmatprep.mubr.bf16.mxu0 0
        %350 = vmatmul.mubr.bf16.gmra.mrb[0].mxu0 %v298
        %v351 = vpop.f32.mrb[0].mxu0
        %v352 = vadd.f32 %v279, %v351
        %v353 = vpop.f32.mrb[0].mxu0
        %v354 = vadd.f32 %v280, %v353
        %v355 = vpop.f32.mrb[0].mxu0
        %v356 = vadd.f32 %v281, %v355
        %v357 = vpop.f32.mrb[0].mxu0
        %v358 = vadd.f32 %v282, %v357
        %359 = vdwg.mxu0
        %v360 = vmax.f32 %v342, 0.0
        %v361 = vmax.f32 %v344, 0.0
        %v362 = vmax.f32 %v346, 0.0
        %v363 = vmax.f32 %v348, 0.0
        %v364 = vmax.f32 %v352, 0.0
        %v365 = vmax.f32 %v354, 0.0
        %v366 = vmax.f32 %v356, 0.0
        %v367 = vmax.f32 %v358, 0.0
        %368 = vst [vmem:[%s260] sm:$0xff] %v360
        %369 = vst [vmem:[%s260 + $0x8] sm:$0xff] %v361
        %370 = vst [vmem:[%s260 + $0x10] sm:$0xff] %v362
        %371 = vst [vmem:[%s260 + $0x18] sm:$0xff] %v363
        %372 = vst [vmem:[%s260 + $0x20] sm:$0xff] %v364
        %373 = vst [vmem:[%s260 + $0x28] sm:$0xff] %v365
        %374 = vst [vmem:[%s260 + $0x30] sm:$0xff] %v366
        %375 = vst [vmem:[%s260 + $0x38] sm:$0xff] %v367
        %s376 = sand.u32 %s120, 1
        %s377 = scalar_lea.sflag [#allocation4], %s376
        %s378 = sand.u32 %s120, 1
        %s379 = smul.addr %s378, 64
        %s380 = scalar_lea.vmem [#allocation8], %s379
        // Predicated region
        $region45: #{_lambda_.1} parent=31 // pred_check
          %p381 = pneg %p130
        $region46: #{_lambda_.1} parent=31 // pred_check_branch
          %383 = sbr.rel (%p381) target = $region48
        $region47: #{_lambda_.1} parent=31 // pred_region
          %s384 = smul.u32 2, %s26
          %s386 = ssub.s32 1024, 1024
          %387 = vsyncadd %s377, %s386
          %s388 = smul.addr %s25, 8
          %s389 = sadd.s32 %s384, %s388
          %s390 = smul.addr %s389, 128
          %s391 = scalar_lea.hbm %s3, %s390
          %s392 = sshll.u32 %s380, 4
          %s393 = int_to_ptr.vmem [resolvable:$true] %s392
          %398 = dma.vmem_to_hbm [thread:$0]  %s393, 1024, %s391, %s377, 256, 256, 16
        $region48: #{_lambda_.1} parent=31 // pred_fallthru
          _
      $region32: #{_lambda_.1} parent=5 // pred_fallthru
        _
      %p399 = scmp.le.s32.totalorder 2, %s16
      // Predicated region
      $region49: #{_lambda_.1} parent=5 // pred_check
        %p400 = pneg %p399
      $region50: #{_lambda_.1} parent=5 // pred_check_branch
        %402 = sbr.rel (%p400) target = $region52
      $region51: #{_lambda_.1} parent=5 // pred_region
        %s403 = ssub.s32 %s16, 2
        // Predicated region
        $region53: #{_lambda_.1} parent=51 // pred_check
          %p404 = pneg %p136
        $region54: #{_lambda_.1} parent=51 // pred_check_branch
          %406 = sbr.rel (%p404) target = $region56
        $region55: #{_lambda_.1} parent=51 // pred_region
          %s407 = sand.u32 %s121, 1
          %s408 = scalar_lea.sflag [#allocation4], %s407
          %s409 = sand.u32 %s121, 1
          %s410 = smul.addr %s409, 64
          %s411 = scalar_lea.vmem [#allocation8], %s410
          %412 = dma.done %s408, 1024
        $region56: #{_lambda_.1} parent=51 // pred_fallthru
          _
      $region52: #{_lambda_.1} parent=5 // pred_fallthru
        _
    $region6: #{_lambda_.1} parent=1 // loop_footer
      %s20 = sadd.s32 1, %s16
    $region7: #{_lambda_.1} parent=1 // loop_footer_branch
      %15 = sbr.rel target = $region3
    $region8: #{_lambda_.1} parent=1 // loop_exit
      _
    %413 = vsyncpa [#allocation3], 1
    %s414 = scalar_lea.sflag [#allocation3], 1
    %415 = vsyncpa %s414, 1
    %416 = vsyncpa [#allocation6], 1
    %417 = vsyncpa [#allocation4], 1
    %s418 = scalar_lea.sflag [#allocation4], 1
    %419 = vsyncpa %s418, 1

</llo_original>
